<compile_context>
chip_gen: v5e
topology: v5e:2x2
jax: 0.10.0
libtpu: 0.0.40
codegen_flags: <defaults>
</compile_context>

<pallas_src>
import functools

import numpy as np
import jax
import jax.numpy as jnp
from jax.experimental import pallas as pl
from jax.experimental.pallas import tpu as pltpu


def _interp_matrix(out_size: int, in_size: int, dtype=np.float32) -> np.ndarray:
    """Bilinear interpolation matrix matching torch align_corners=False."""
    o = np.arange(out_size, dtype=np.float64)
    src = (o + 0.5) * (in_size / out_size) - 0.5
    src = np.maximum(src, 0.0)                       # torch clamps negative src to 0
    i0 = np.minimum(np.floor(src).astype(np.int64), in_size - 1)
    i1 = np.minimum(i0 + 1, in_size - 1)
    lam = src - i0
    mat = np.zeros((out_size, in_size), dtype=np.float64)
    mat[np.arange(out_size), i0] += 1.0 - lam
    mat[np.arange(out_size), i1] += lam
    return mat.astype(dtype)


def _h_phases(s: int):
    """Two-tap (shift, weight, shift, weight) per output-row phase p = oh % s."""
    phases = []
    for p in range(s):
        delta = (p + 0.5) / s - 0.5          # src offset relative to input row k
        if delta < 0.0:                       # taps: rows k-1, k (clamped at 0)
            phases.append((-1, float(-delta), 0, float(1.0 + delta)))
        else:                                 # taps: rows k, k+1 (clamped at H-1)
            phases.append((0, float(1.0 - delta), 1, float(delta)))
    return tuple(phases)


def _interp_kernel(x_ref, awt_ref, o_ref, *, phases):
    # x_ref:  (TB, H, W)      input channel-slab block
    # awt_ref:(W, Wo)         static width-interpolation matrix (transposed)
    # o_ref:  (TB, H, s*Wo)   output viewed with the s row-phases on the lane axis
    tb, h, w = x_ref.shape
    wo = awt_ref.shape[1]
    x = x_ref[...].astype(jnp.float32)

    # ---- width axis: single flattened MXU matmul (column interleave is in AwT) ----
    t = jnp.dot(x.reshape(tb * h, w), awt_ref[...],
                preferred_element_type=jnp.float32)
    t = t.reshape(tb, h, wo)                                   # (TB, H, Wo)

    # ---- height axis: per-phase two-tap weighted adds on the VPU ----
    t_up = jnp.concatenate([t[:, :1, :], t[:, :-1, :]], axis=1)    # row k-1, edge-clamped
    t_dn = jnp.concatenate([t[:, 1:, :], t[:, -1:, :]], axis=1)    # row k+1, edge-clamped

    outs = []
    for d0, w0, d1, w1 in phases:          # static python unroll (s is tiny)
        a = t_up if d0 == -1 else t
        b = t_dn if d1 == 1 else t
        outs.append(jnp.float32(w0) * a + jnp.float32(w1) * b)
    res = outs[0] if len(outs) == 1 else jnp.concatenate(outs, axis=-1)
    o_ref[...] = res.astype(o_ref.dtype)                       # (TB, H, s*Wo)


def interpolate_bilinear(x: jax.Array, scale_factor) -> jax.Array:
    """x: (N, C, H, W) -> (N, C, H*s, W*s), bilinear, align_corners=False."""
    n, c, h, w = x.shape
    s = int(round(float(scale_factor)))
    # TODO(synk): non-integer scale_factor and modes other than 'bilinear'.
    assert s >= 1 and float(s) == float(scale_factor), "integer scale_factor only"
    ho, wo = h * s, w * s
    nc = n * c

    awt = jnp.asarray(_interp_matrix(wo, w).T)        # (W, Wo)
    phases = _h_phases(s)
    xf = x.reshape(nc, h, w)                          # free reshape (NCHW order kept)

    # Channel-block size TB: big enough for multi-hundred-KB DMAs (amortizes the
    # per-grid-step overhead), small enough that double-buffered blocks plus f32
    # intermediates stay inside the VMEM limit on every TPU generation.
    per_slab = 4 * h * w * (2 + 2 * s * s + (3 + s) * s)   # bytes per channel slab
    cap = max(1, (10 * 1024 * 1024) // per_slab)
    cap = min(cap, -(-nc // 2))       # keep >=2 grid steps so both v7x TCs get work
    tb = 1
    for d in range(min(cap, nc), 0, -1):   # largest divisor of NC <= cap (no ragged blocks)
        if nc % d == 0:
            tb = d
            break
    grid = nc // tb

    out = pl.pallas_call(
        functools.partial(_interp_kernel, phases=phases),
        # Output allocated as (NC, H, s*Wo): a free reshape of (NC, Ho, Wo) that
        # puts the s row-phases on the lane axis -> wide, contiguous stores.
        out_shape=jax.ShapeDtypeStruct((nc, h, s * wo), x.dtype),
        grid_spec=pltpu.PrefetchScalarGridSpec(
            num_scalar_prefetch=0,
            grid=(grid,),
            in_specs=[
                pl.BlockSpec((tb, h, w), lambda i: (i, 0, 0)),   # TB channel slabs / step
                pl.BlockSpec((w, wo), lambda i: (0, 0)),         # constant block: fetched once
            ],
            out_specs=pl.BlockSpec((tb, h, s * wo), lambda i: (i, 0, 0)),
        ),
        compiler_params=pltpu.CompilerParams(
            dimension_semantics=("parallel",),          # megacore sharding on v7x
            vmem_limit_bytes=32 * 1024 * 1024,          # raise v5e's 16 MiB default, safe on v7x
        ),
    )(xf, awt)
    return out.reshape(n, c, ho, wo)


if __name__ == "__main__":
    key = jax.random.PRNGKey(0)
    x = jax.random.normal(key, (2, 4, 16, 16), dtype=jnp.float32)  # NCHW

    y = interpolate_bilinear(x, scale_factor=2)
    y = jax.block_until_ready(y)
    assert y.shape == (2, 4, 32, 32), y.shape

    # Cross-check against jax.image.resize (half-pixel bilinear == torch
    # align_corners=False for upsampling).
    ref = jax.image.resize(x, (2, 4, 32, 32), method="bilinear")
    np.testing.assert_allclose(np.asarray(y), np.asarray(ref), rtol=1e-5, atol=1e-5)

    print("KERNEL_OK")
</pallas_src>

<mosaic_0001>
module attributes {stable_mosaic.version = 11 : i64} {
  func.func @_interp_kernel(%arg0: i32, %arg1: memref<4x16x16xf32, #tpu.memory_space<vmem>>, %arg2: memref<16x32xf32, #tpu.memory_space<vmem>>, %arg3: memref<4x16x64xf32, #tpu.memory_space<vmem>>) attributes {dimension_semantics = [#tpu.dimension_semantics<parallel>], iteration_bounds = array<i64: 2>, scalar_prefetch = 0 : i64, scratch_operands = 0 : i64, tpu.core_type = #tpu.core_type<tc>, window_params = [{transform_indices = @transform_0, window_bounds = array<i64: 4, 16, 16>}, {pipeline_mode = #tpu.pipeline_mode<synchronous>, transform_indices = @transform_1, window_bounds = array<i64: 16, 32>}, {transform_indices = @transform_2, window_bounds = array<i64: 4, 16, 64>}]} {
    %c0 = arith.constant 0 : index
    %c0_0 = arith.constant 0 : index
    %c0_1 = arith.constant 0 : index
    %0 = vector.load %arg1[%c0, %c0_0, %c0_1] : memref<4x16x16xf32, #tpu.memory_space<vmem>>, vector<4x16x16xf32>
    %1 = vector.shape_cast %0 : vector<4x16x16xf32> to vector<64x16xf32>
    %c0_2 = arith.constant 0 : index
    %c0_3 = arith.constant 0 : index
    %2 = vector.load %arg2[%c0_2, %c0_3] : memref<16x32xf32, #tpu.memory_space<vmem>>, vector<16x32xf32>
    %cst = arith.constant dense<0.000000e+00> : vector<64x32xf32>
    %3 = tpu.matmul %1, %2, %cst {dimension_numbers = #tpu.dot_dimension_numbers<[1], [0], [0], [1], [0, 0, 1, 1], [], []>} : vector<64x16xf32>, vector<16x32xf32>, vector<64x32xf32> -> vector<64x32xf32>
    %4 = vector.shape_cast %3 : vector<64x32xf32> to vector<4x16x32xf32>
    %5 = vector.extract_strided_slice %4 {offsets = [0, 0, 0], sizes = [4, 1, 32], strides = [1, 1, 1]} : vector<4x16x32xf32> to vector<4x1x32xf32>
    %6 = vector.extract_strided_slice %4 {offsets = [0, 0, 0], sizes = [4, 15, 32], strides = [1, 1, 1]} : vector<4x16x32xf32> to vector<4x15x32xf32>
    %7 = tpu.concatenate %5, %6 in 1 : vector<4x1x32xf32>, vector<4x15x32xf32> -> vector<4x16x32xf32>
    %8 = vector.extract_strided_slice %4 {offsets = [0, 1, 0], sizes = [4, 15, 32], strides = [1, 1, 1]} : vector<4x16x32xf32> to vector<4x15x32xf32>
    %9 = vector.extract_strided_slice %4 {offsets = [0, 15, 0], sizes = [4, 1, 32], strides = [1, 1, 1]} : vector<4x16x32xf32> to vector<4x1x32xf32>
    %10 = tpu.concatenate %8, %9 in 1 : vector<4x15x32xf32>, vector<4x1x32xf32> -> vector<4x16x32xf32>
    %cst_4 = arith.constant 2.500000e-01 : f32
    %11 = vector.broadcast %cst_4 : f32 to vector<4x16x32xf32>
    %12 = arith.mulf %11, %7 : vector<4x16x32xf32>
    %cst_5 = arith.constant 7.500000e-01 : f32
    %13 = vector.broadcast %cst_5 : f32 to vector<4x16x32xf32>
    %14 = arith.mulf %13, %4 : vector<4x16x32xf32>
    %15 = arith.addf %12, %14 : vector<4x16x32xf32>
    %cst_6 = arith.constant 7.500000e-01 : f32
    %16 = vector.broadcast %cst_6 : f32 to vector<4x16x32xf32>
    %17 = arith.mulf %16, %4 : vector<4x16x32xf32>
    %cst_7 = arith.constant 2.500000e-01 : f32
    %18 = vector.broadcast %cst_7 : f32 to vector<4x16x32xf32>
    %19 = arith.mulf %18, %10 : vector<4x16x32xf32>
    %20 = arith.addf %17, %19 : vector<4x16x32xf32>
    %21 = tpu.concatenate %15, %20 in 2 : vector<4x16x32xf32>, vector<4x16x32xf32> -> vector<4x16x64xf32>
    %c0_8 = arith.constant 0 : index
    %c0_9 = arith.constant 0 : index
    %c0_10 = arith.constant 0 : index
    %22 = vector.load %arg3[%c0_8, %c0_9, %c0_10] : memref<4x16x64xf32, #tpu.memory_space<vmem>>, vector<4x16x64xf32>
    tpu.vector_store %arg3[%c0_8, %c0_9, %c0_10], %21 {strides = array<i32>} : memref<4x16x64xf32, #tpu.memory_space<vmem>>, vector<4x16x64xf32>,
    return
  }
  func.func @transform_0(%arg0: i32) -> (i32, i32, i32) {
    %c0_i32 = arith.constant 0 : i32
    %c0_i32_0 = arith.constant 0 : i32
    %c0_i32_1 = arith.constant 0 : i32
    return %arg0, %c0_i32, %c0_i32_0 : i32, i32, i32
  }
  func.func @transform_1(%arg0: i32) -> (i32, i32) {
    %c0_i32 = arith.constant 0 : i32
    %c0_i32_0 = arith.constant 0 : i32
    %c0_i32_1 = arith.constant 0 : i32
    return %c0_i32, %c0_i32_0 : i32, i32
  }
  func.func @transform_2(%arg0: i32) -> (i32, i32, i32) {
    %c0_i32 = arith.constant 0 : i32
    %c0_i32_0 = arith.constant 0 : i32
    %c0_i32_1 = arith.constant 0 : i32
    return %arg0, %c0_i32, %c0_i32_0 : i32, i32, i32
  }
}

</mosaic_0001>

<llo_original>
// kernel: tpu_custom_call.1
$region0: #{tpu_custom_call.1}
  #allocation0 [shape = 'u32[]', space=smem, size = 0x4, offset = 0x4, fixed_abs, tag = 'smem constant byte address 0x4 - core index']
  #allocation1 [shape = 'u32[72,128]{1,0:T(1,128)}', space=vmem, size = 0x9000, scoped, tag = 'internal scratch']
  %s0 = inlined_call_operand.hbm [shape: f32[8,16,16], index: 0, kind: input, shape index: {}]
  %s1 = inlined_call_operand.hbm [shape: f32[16,32], index: 1, kind: input, shape index: {}]
  %s2 = inlined_call_operand.hbm [shape: f32[8,16,64], index: 2, kind: output, shape index: {}]
  %s3 = sld [smem:[#allocation0]]
  $region49: #{tpu_custom_call.1} parent=0
    _
  %s5 = ssub.s32 1, %s3
  %s6 = scalar_select 0, %s5, %s3
  $region1: #{tpu_custom_call.1} parent=0
    #allocation2 [shape = 'u8[65536]{0}', space=vmem, size = 0x10000, scoped, tag = 'input window, operand 0']
    #allocation3 [shape = 's32[2]{0}', space=sflag, size = 0x8, scoped, tag = 'scoped memory for tpu_custom_call.1']
    #allocation4 [shape = 's32[2]{0}', space=sflag, size = 0x8, scoped, tag = 'scoped memory for tpu_custom_call.1']
    #allocation5 [shape = 'u8[8192]{0}', space=vmem, size = 0x2000, scoped, tag = 'input window, operand 1, single buffered']
    #allocation6 [shape = 's32[1]{0}', space=sflag, size = 0x4, scoped, tag = 'scoped memory for tpu_custom_call.1']
    #allocation7 [shape = 'u8[65536]{0}', space=vmem, size = 0x10000, scoped, tag = 'output window, operand 0']
    %7 = vsyncpa [#allocation3], 0
    %s8 = scalar_lea.sflag [#allocation3], 1
    %9 = vsyncpa %s8, 0
    %10 = vsyncpa [#allocation6], 0
    %11 = vsyncpa [#allocation4], 0
    %s12 = scalar_lea.sflag [#allocation4], 1
    %13 = vsyncpa %s12, 0
    loop: start=0, step=1, limit=4
    $region2: #{tpu_custom_call.1} parent=1 // loop_pre_header
      _
    $region3: #{tpu_custom_call.1} parent=1 // loop_header
      %s15 = sphi 0, %s19
      %p16 = scmp.ge.s32.totalorder %s15, 4
      %s25 = sphi 0, %s27
      %s28 = sphi 0, %s25
      %s29 = sphi 0, %s28
      %s45 = sphi 0, %s29
      %s49 = sphi 0, %s49
      %s51 = sphi 0, %s49
      %s52 = sphi 0, %s51
      %s66 = sphi 0, %s52
      %s72 = sphi 0, %s74
      %s75 = sphi 0, %s72
      %s76 = sphi 0, %s75
      %s92 = sphi 0, %s76
    $region4: #{tpu_custom_call.1} parent=1 // loop_header_branch
      %18 = sbr.rel (%p16) target = $region8
    $region5: #{tpu_custom_call.1} parent=1 // loop_body
      %s20 = ssub.s32 %s15, 1
      %s21 = ssub.s32 %s15, 2
      %s22 = sadd.s32 %s15, 1
      %s23 = ssub.s32 %s15, %s22
      %p24 = scmp.eq.s32.totalorder %s23, 0
      %s26 = sadd.s32 %s25, 1
      %s27 = scalar_select %p24, %s25, %s26
      %p30 = pneg %p24
      %p31 = scmp.eq.s32.totalorder %s15, 1
      %p32 = por %p30, %p31
      %p33 = scmp.ne.s32.totalorder %s25, %s28
      %p34 = scmp.eq.s32.totalorder %s15, 0
      %p35 = por %p33, %p34
      %p36 = scmp.ne.s32.totalorder %s25, %s28
      %p37 = scmp.eq.s32.totalorder %s20, 1
      %p38 = por %p36, %p37
      %p39 = scmp.ne.s32.totalorder %s28, %s29
      %p40 = scmp.eq.s32.totalorder %s20, 0
      %p41 = por %p39, %p40
      %p42 = scmp.ne.s32.totalorder %s28, %s29
      %p43 = scmp.eq.s32.totalorder %s21, 1
      %p44 = por %p42, %p43
      %p46 = scmp.ne.s32.totalorder %s29, %s45
      %p47 = scmp.eq.s32.totalorder %s21, 0
      %p48 = por %p46, %p47
      %s50 = sadd.s32 %s49, 1
      %p53 = scmp.eq.s32.totalorder %s15, 1
      %p54 = scmp.ne.s32.totalorder %s49, %s51
      %p55 = scmp.eq.s32.totalorder %s15, 0
      %p56 = por %p54, %p55
      %p57 = scmp.ne.s32.totalorder %s49, %s51
      %p58 = scmp.eq.s32.totalorder %s20, 1
      %p59 = por %p57, %p58
      %p60 = scmp.ne.s32.totalorder %s51, %s52
      %p61 = scmp.eq.s32.totalorder %s20, 0
      %p62 = por %p60, %p61
      %p63 = scmp.ne.s32.totalorder %s51, %s52
      %p64 = scmp.eq.s32.totalorder %s21, 1
      %p65 = por %p63, %p64
      %p67 = scmp.ne.s32.totalorder %s52, %s66
      %p68 = scmp.eq.s32.totalorder %s21, 0
      %p69 = por %p67, %p68
      %s70 = ssub.s32 %s15, %s22
      %p71 = scmp.eq.s32.totalorder %s70, 0
      %s73 = sadd.s32 %s72, 1
      %s74 = scalar_select %p71, %s72, %s73
      %p77 = pneg %p71
      %p78 = scmp.eq.s32.totalorder %s15, 1
      %p79 = por %p77, %p78
      %p80 = scmp.ne.s32.totalorder %s72, %s75
      %p81 = scmp.eq.s32.totalorder %s15, 0
      %p82 = por %p80, %p81
      %p83 = scmp.ne.s32.totalorder %s72, %s75
      %p84 = scmp.eq.s32.totalorder %s20, 1
      %p85 = por %p83, %p84
      %p86 = scmp.ne.s32.totalorder %s75, %s76
      %p87 = scmp.eq.s32.totalorder %s20, 0
      %p88 = por %p86, %p87
      %p89 = scmp.ne.s32.totalorder %s75, %s76
      %p90 = scmp.eq.s32.totalorder %s21, 1
      %p91 = por %p89, %p90
      %p93 = scmp.ne.s32.totalorder %s76, %s92
      %p94 = scmp.eq.s32.totalorder %s21, 0
      %p95 = por %p93, %p94
      %p96 = scmp.le.s32.totalorder 1, %s15
      %p97 = scmp.lt.s32.totalorder %s15, 3
      %p98 = pnand %p96, %p97
      %p99 = pneg %p98
      // Predicated region
      $region9: #{tpu_custom_call.1} parent=5 // pred_check
        _
      $region10: #{tpu_custom_call.1} parent=5 // pred_check_branch
        %101 = sbr.rel (%p98) target = $region12
      $region11: #{tpu_custom_call.1} parent=5 // pred_region
        %s102 = ssub.s32 %s15, 1
        // Predicated region
        $region13: #{tpu_custom_call.1} parent=11 // pred_check
          %p103 = pneg %p62
        $region14: #{tpu_custom_call.1} parent=11 // pred_check_branch
          %105 = sbr.rel (%p103) target = $region16
        $region15: #{tpu_custom_call.1} parent=11 // pred_region
          %107 = vsyncadd [#allocation6], 0
          %s108 = sshll.u32 %s1, 4
          %s109 = int_to_ptr.hbm [resolvable:$true] %s108
          %s110 = sshll.u32 [#allocation5], 4
          %s111 = int_to_ptr.vmem [resolvable:$true] %s110
          %116 = dma.hbm_to_vmem [thread:$0]  %s109, 256, %s111, [#allocation6], 128, 128, 8
        $region16: #{tpu_custom_call.1} parent=11 // pred_fallthru
          _
      $region12: #{tpu_custom_call.1} parent=5 // pred_fallthru
        _
      %p117 = scmp.lt.s32.totalorder %s15, 2
      // Predicated region
      $region17: #{tpu_custom_call.1} parent=5 // pred_check
        %p118 = pneg %p117
      $region18: #{tpu_custom_call.1} parent=5 // pred_check_branch
        %120 = sbr.rel (%p118) target = $region20
      $region19: #{tpu_custom_call.1} parent=5 // pred_region
        // Predicated region
        $region21: #{tpu_custom_call.1} parent=19 // pred_check
          %p121 = pneg %p35
        $region22: #{tpu_custom_call.1} parent=19 // pred_check_branch
          %123 = sbr.rel (%p121) target = $region24
        $region23: #{tpu_custom_call.1} parent=19 // pred_region
          %s124 = sand.u32 %s25, 1
          %s125 = scalar_lea.sflag [#allocation3], %s124
          %s126 = sand.u32 %s25, 1
          %s127 = smul.addr %s126, 64
          %s128 = scalar_lea.vmem [#allocation2], %s127
          %s129 = smul.u32 4, %s15
          %131 = vsyncadd %s125, 0
          %s132 = smul.addr %s129, 2
          %s133 = smul.addr %s132, 8
          %s134 = scalar_lea.hbm %s0, %s133
          %s135 = sshll.u32 %s134, 4
          %s136 = int_to_ptr.hbm [resolvable:$true] %s135
          %s137 = sshll.u32 %s128, 4
          %s138 = int_to_ptr.vmem [resolvable:$true] %s137
          %143 = dma.hbm_to_vmem [thread:$0]  %s136, 1024, %s138, %s125, 128, 128, 8
        $region24: #{tpu_custom_call.1} parent=19 // pred_fallthru
          _
      $region20: #{tpu_custom_call.1} parent=5 // pred_fallthru
        _
      %p144 = scmp.le.s32.totalorder 1, %s15
      %p145 = scmp.lt.s32.totalorder %s15, 3
      %p146 = pnand %p144, %p145
      %p147 = pneg %p146
      // Predicated region
      $region25: #{tpu_custom_call.1} parent=5 // pred_check
        _
      $region26: #{tpu_custom_call.1} parent=5 // pred_check_branch
        %149 = sbr.rel (%p146) target = $region28
      $region27: #{tpu_custom_call.1} parent=5 // pred_region
        %s150 = ssub.s32 %s15, 1
        %s151 = sand.u32 %s28, 1
        %s152 = scalar_lea.sflag [#allocation3], %s151
        %s153 = sand.u32 %s28, 1
        %s154 = smul.addr %s153, 64
        %s155 = scalar_lea.vmem [#allocation2], %s154
        // Predicated region
        $region29: #{tpu_custom_call.1} parent=27 // pred_check
          %p156 = pneg %p41
        $region30: #{tpu_custom_call.1} parent=27 // pred_check_branch
          %158 = sbr.rel (%p156) target = $region32
        $region31: #{tpu_custom_call.1} parent=27 // pred_region
          %160 = dma.done %s152, 1024
        $region32: #{tpu_custom_call.1} parent=27 // pred_fallthru
          _
        // Predicated region
        $region33: #{tpu_custom_call.1} parent=27 // pred_check
          %p161 = pneg %p62
        $region34: #{tpu_custom_call.1} parent=27 // pred_check_branch
          %163 = sbr.rel (%p161) target = $region36
        $region35: #{tpu_custom_call.1} parent=27 // pred_region
          %165 = dma.done [#allocation6], 256
        $region36: #{tpu_custom_call.1} parent=27 // pred_fallthru
          _
        %s166 = sand.u32 %s28, 1
        %s167 = scalar_lea.sflag [#allocation3], %s166
        %s168 = sand.u32 %s28, 1
        %s169 = smul.addr %s168, 64
        %s170 = scalar_lea.vmem [#allocation2], %s169
        %p171 = pneg %p41
        %p172 = pneg %p38
        %p173 = pneg %p62
        %p174 = pneg %p59
        %p175 = pneg %p88
        %p176 = pneg %p85
        %s177 = sand.u32 %s75, 1
        %s178 = scalar_lea.sflag [#allocation4], %s177
        %s179 = sand.u32 %s75, 1
        %s180 = smul.addr %s179, 64
        %s181 = scalar_lea.vmem [#allocation7], %s180
        %s182 = smul.u32 4, %s20
        %s183 = smul.u32 4, %s20
        %v184 = vld [vmem:[%s155] sm:$0xff]
        %v185 = vld [vmem:[%s155 + $0x8] sm:$0xff]
        %v186 = vld [vmem:[%s155 + $0x10] sm:$0xff]
        %v187 = vld [vmem:[%s155 + $0x18] sm:$0xff]
        %v188 = vld [vmem:[%s155 + $0x20] sm:$0xff]
        %v189 = vld [vmem:[%s155 + $0x28] sm:$0xff]
        %v190 = vld [vmem:[%s155 + $0x30] sm:$0xff]
        %v191 = vld [vmem:[%s155 + $0x38] sm:$0xff]
        %v192 = vld [vmem:[#allocation5] sm:$0xff]
        %v193 = vld [vmem:[#allocation5 + $0x8] sm:$0xff]
        %vm194 = vcmask 130048
        %v196 = vsel %vm194, %v184, 0
        %v199 = vsel %vm194, %v185, 0
        %v202 = vsel %vm194, %v186, 0
        %v205 = vsel %vm194, %v187, 0
        %v208 = vsel %vm194, %v188, 0
        %v211 = vsel %vm194, %v189, 0
        %v214 = vsel %vm194, %v190, 0
        %v217 = vsel %vm194, %v191, 0
        %219 = vmatpush.msra.mxu0 0.0
        %220 = vmatpush.msra.mxu0 0.0
        %221 = vmatpush.msra.mxu0 0.0
        %222 = vmatpush.msra.mxu0 0.0
        %223 = vmatpush.msra.mxu0 0.0
        %224 = vmatpush.msra.mxu0 0.0
        %225 = vmatpush.msra.mxu0 0.0
        %226 = vmatpush.msra.mxu0 0.0
        %227 = vmatpush.msra.mxu0 0.0
        %228 = vmatpush.msra.mxu0 0.0
        %229 = vmatpush.msra.mxu0 0.0
        %230 = vmatpush.msra.mxu0 0.0
        %231 = vmatpush.msra.mxu0 0.0
        %232 = vmatpush.msra.mxu0 0.0
        %233 = vmatpush.msra.mxu0 %v193
        %234 = vmatpush.msra.mxu0 %v192
        %235 = vmatmul.f32.gmra.mxu0 %v196
        %v236 = vpop.f32.mrf.mxu0
        %v237 = vadd.f32 0.0, %v236
        %238 = vmatmul.f32.gmra.mxu0 %v199
        %v239 = vpop.f32.mrf.mxu0
        %v240 = vadd.f32 0.0, %v239
        %241 = vmatmul.f32.gmra.mxu0 %v202
        %v242 = vpop.f32.mrf.mxu0
        %v243 = vadd.f32 0.0, %v242
        %244 = vmatmul.f32.gmra.mxu0 %v205
        %v245 = vpop.f32.mrf.mxu0
        %v246 = vadd.f32 0.0, %v245
        %247 = vmatmul.f32.gmra.mxu0 %v208
        %v248 = vpop.f32.mrf.mxu0
        %v249 = vadd.f32 0.0, %v248
        %250 = vmatmul.f32.gmra.mxu0 %v211
        %v251 = vpop.f32.mrf.mxu0
        %v252 = vadd.f32 0.0, %v251
        %253 = vmatmul.f32.gmra.mxu0 %v214
        %v254 = vpop.f32.mrf.mxu0
        %v255 = vadd.f32 0.0, %v254
        %256 = vmatmul.f32.gmra.mxu0 %v217
        %v257 = vpop.f32.mrf.mxu0
        %v258 = vadd.f32 0.0, %v257
        %259 = vdwg.mxu0
        %vm268 = vcmask 1040384
        %v269 = vrot.slane %v237, 7
        %v270 = vrot.slane %v240, 7
        %v271 = vsel %vm268, %v269, %v270
        %v272 = vrot.slane %v243, 7
        %v273 = vrot.slane %v246, 7
        %v274 = vsel %vm268, %v272, %v273
        %v275 = vrot.slane %v249, 7
        %v276 = vrot.slane %v252, 7
        %v277 = vsel %vm268, %v275, %v276
        %v278 = vrot.slane %v255, 7
        %v279 = vrot.slane %v258, 7
        %v280 = vsel %vm268, %v278, %v279
        %v289 = vsel %vm268, %v237, %v269
        %v290 = vsel %vm268, %v243, %v272
        %v291 = vsel %vm268, %v249, %v275
        %v292 = vsel %vm268, %v255, %v278
        %vm293 = vcmask 1046528
        %v294 = vrot.slane %v237, 1
        %v295 = vrot.slane %v240, 1
        %v296 = vsel %vm293, %v294, %v295
        %v297 = vrot.slane %v243, 1
        %v298 = vrot.slane %v246, 1
        %v299 = vsel %vm293, %v297, %v298
        %v300 = vrot.slane %v249, 1
        %v301 = vrot.slane %v252, 1
        %v302 = vsel %vm293, %v300, %v301
        %v303 = vrot.slane %v255, 1
        %v304 = vrot.slane %v258, 1
        %v305 = vsel %vm293, %v303, %v304
        %v314 = vsel %vm293, %v295, %v240
        %v315 = vsel %vm293, %v298, %v246
        %v316 = vsel %vm293, %v301, %v252
        %v317 = vsel %vm293, %v304, %v258
        %v318 = vmul.f32 %v289, 0.25
        %v319 = vmul.f32 %v271, 0.25
        %v320 = vmul.f32 %v290, 0.25
        %v321 = vmul.f32 %v274, 0.25
        %v322 = vmul.f32 %v291, 0.25
        %v323 = vmul.f32 %v277, 0.25
        %v324 = vmul.f32 %v292, 0.25
        %v325 = vmul.f32 %v280, 0.25
        %v326 = vmul.f32 %v237, 0.75
        %v327 = vmul.f32 %v240, 0.75
        %v328 = vmul.f32 %v243, 0.75
        %v329 = vmul.f32 %v246, 0.75
        %v330 = vmul.f32 %v249, 0.75
        %v331 = vmul.f32 %v252, 0.75
        %v332 = vmul.f32 %v255, 0.75
        %v333 = vmul.f32 %v258, 0.75
        %v334 = vadd.f32 %v318, %v326
        %v335 = vadd.f32 %v319, %v327
        %v336 = vadd.f32 %v320, %v328
        %v337 = vadd.f32 %v321, %v329
        %v338 = vadd.f32 %v322, %v330
        %v339 = vadd.f32 %v323, %v331
        %v340 = vadd.f32 %v324, %v332
        %v341 = vadd.f32 %v325, %v333
        %v342 = vmul.f32 %v296, 0.25
        %v343 = vmul.f32 %v314, 0.25
        %v344 = vmul.f32 %v299, 0.25
        %v345 = vmul.f32 %v315, 0.25
        %v346 = vmul.f32 %v302, 0.25
        %v347 = vmul.f32 %v316, 0.25
        %v348 = vmul.f32 %v305, 0.25
        %v349 = vmul.f32 %v317, 0.25
        %v350 = vadd.f32 %v326, %v342
        %v351 = vadd.f32 %v327, %v343
        %v352 = vadd.f32 %v328, %v344
        %v353 = vadd.f32 %v329, %v345
        %v354 = vadd.f32 %v330, %v346
        %v355 = vadd.f32 %v331, %v347
        %v356 = vadd.f32 %v332, %v348
        %v357 = vadd.f32 %v333, %v349
        %366 = vrot.lane.b32.xlu0 %v350, 32
        %v367 = vpop.permute.xlu0 %366
        %368 = vrot.lane.b32.xlu0 %v351, 32
        %v369 = vpop.permute.xlu0 %368
        %370 = vrot.lane.b32.xlu0 %v352, 32
        %v371 = vpop.permute.xlu0 %370
        %372 = vrot.lane.b32.xlu0 %v353, 32
        %v373 = vpop.permute.xlu0 %372
        %374 = vrot.lane.b32.xlu0 %v354, 32
        %v375 = vpop.permute.xlu0 %374
        %376 = vrot.lane.b32.xlu0 %v355, 32
        %v377 = vpop.permute.xlu0 %376
        %378 = vrot.lane.b32.xlu0 %v356, 32
        %v379 = vpop.permute.xlu0 %378
        %380 = vrot.lane.b32.xlu0 %v357, 32
        %v381 = vpop.permute.xlu0 %380
        %vm390 = vcmask 261120
        %v391 = vsel %vm390, %v334, %v367
        %v392 = vsel %vm390, %v335, %v369
        %v393 = vsel %vm390, %v336, %v371
        %v394 = vsel %vm390, %v337, %v373
        %v395 = vsel %vm390, %v338, %v375
        %v396 = vsel %vm390, %v339, %v377
        %v397 = vsel %vm390, %v340, %v379
        %v398 = vsel %vm390, %v341, %v381
        %vm399 = vcmask 523264
        %400 = vst.msk [vmem:[%s181] sm:$0xff] %vm399, %v391
        %401 = vst.msk [vmem:[%s181 + $0x8] sm:$0xff] %vm399, %v392
        %402 = vst.msk [vmem:[%s181 + $0x10] sm:$0xff] %vm399, %v393
        %403 = vst.msk [vmem:[%s181 + $0x18] sm:$0xff] %vm399, %v394
        %404 = vst.msk [vmem:[%s181 + $0x20] sm:$0xff] %vm399, %v395
        %405 = vst.msk [vmem:[%s181 + $0x28] sm:$0xff] %vm399, %v396
        %406 = vst.msk [vmem:[%s181 + $0x30] sm:$0xff] %vm399, %v397
        %407 = vst.msk [vmem:[%s181 + $0x38] sm:$0xff] %vm399, %v398
        %s408 = sand.u32 %s75, 1
        %s409 = scalar_lea.sflag [#allocation4], %s408
        %s410 = sand.u32 %s75, 1
        %s411 = smul.addr %s410, 64
        %s412 = scalar_lea.vmem [#allocation7], %s411
        // Predicated region
        $region37: #{tpu_custom_call.1} parent=27 // pred_check
          %p413 = pneg %p85
        $region38: #{tpu_custom_call.1} parent=27 // pred_check_branch
          %415 = sbr.rel (%p413) target = $region40
        $region39: #{tpu_custom_call.1} parent=27 // pred_region
          %s416 = smul.u32 4, %s20
          %418 = vsyncadd %s409, 0
          %s419 = smul.addr %s416, 2
          %s420 = smul.addr %s419, 8
          %s421 = scalar_lea.hbm %s2, %s420
          %s422 = sshll.u32 %s412, 4
          %s423 = int_to_ptr.vmem [resolvable:$true] %s422
          %s424 = sshll.u32 %s421, 4
          %s425 = int_to_ptr.hbm [resolvable:$true] %s424
          %430 = dma.vmem_to_hbm [thread:$0]  %s423, 1024, %s425, %s409, 128, 128, 8
        $region40: #{tpu_custom_call.1} parent=27 // pred_fallthru
          _
      $region28: #{tpu_custom_call.1} parent=5 // pred_fallthru
        _
      %p431 = scmp.le.s32.totalorder 2, %s15
      // Predicated region
      $region41: #{tpu_custom_call.1} parent=5 // pred_check
        %p432 = pneg %p431
      $region42: #{tpu_custom_call.1} parent=5 // pred_check_branch
        %434 = sbr.rel (%p432) target = $region44
      $region43: #{tpu_custom_call.1} parent=5 // pred_region
        %s435 = ssub.s32 %s15, 2
        // Predicated region
        $region45: #{tpu_custom_call.1} parent=43 // pred_check
          %p436 = pneg %p91
        $region46: #{tpu_custom_call.1} parent=43 // pred_check_branch
          %438 = sbr.rel (%p436) target = $region48
        $region47: #{tpu_custom_call.1} parent=43 // pred_region
          %s439 = sand.u32 %s76, 1
          %s440 = scalar_lea.sflag [#allocation4], %s439
          %s441 = sand.u32 %s76, 1
          %s442 = smul.addr %s441, 64
          %s443 = scalar_lea.vmem [#allocation7], %s442
          %445 = dma.done %s440, 1024
        $region48: #{tpu_custom_call.1} parent=43 // pred_fallthru
          _
      $region44: #{tpu_custom_call.1} parent=5 // pred_fallthru
        _
    $region6: #{tpu_custom_call.1} parent=1 // loop_footer
      %s19 = sadd.s32 1, %s15
    $region7: #{tpu_custom_call.1} parent=1 // loop_footer_branch
      %14 = sbr.rel target = $region3
    $region8: #{tpu_custom_call.1} parent=1 // loop_exit
      _
    %446 = vsyncpa [#allocation3], 1
    %s447 = scalar_lea.sflag [#allocation3], 1
    %448 = vsyncpa %s447, 1
    %449 = vsyncpa [#allocation6], 1
    %450 = vsyncpa [#allocation4], 1
    %s451 = scalar_lea.sflag [#allocation4], 1
    %452 = vsyncpa %s451, 1

</llo_original>
